<compile_context>
chip_gen: v7x
topology: tpu7x:2x2x1
jax: 0.10.0
libtpu: 0.0.40
codegen_flags: <defaults>
</compile_context>

<pallas_src>
import jax
import jax.numpy as jnp
from jax.experimental import pallas as pl
from jax.experimental.pallas import tpu as pltpu

_LANE = 128


def _round_up(x, m):
  return (x + m - 1) // m * m


def _vmem_capacity_bytes():
  """Physical VMEM per core; conservative 64 MiB (v7x) fallback if the query fails."""
  try:
    return int(pltpu.get_tpu_info().vmem_capacity_bytes)
  except Exception:  # pragma: no cover - depends on runtime environment
    return 64 * 1024 * 1024


# --------------------------------------------------------------------------------------
# Resident path: gridless kernel, everything single-buffered in VMEM, rounds unrolled.
# --------------------------------------------------------------------------------------
def _make_resident_kernel(num_rounds):
  def kernel(state0_ref, adjT_ref, poolT_ref, valid_ref,
             wm_ref, bm_ref, wu_ref, bu_ref, we_ref, be_ref, out_ref):
    state = state0_ref[...]          # (S, N_pad) f32 analytic round-0 state
    valid = valid_ref[...]           # (1, N_pad)  1.0 real node, 0.0 padding
    for r in range(1, num_rounds):
      # Wu fused into the message:  msg2 = Wu_r @ ReLU(Wm_r @ state + bm_r)
      msg = jnp.maximum(
          jnp.dot(wm_ref[r], state, preferred_element_type=jnp.float32)
          + bm_ref[r], 0.0)
      msg2 = jnp.dot(wu_ref[r], msg, preferred_element_type=jnp.float32)
      # Aggregate + update in one MXU pass:  upd = ReLU(msg2 @ A_T + bu_r)
      agg = jnp.dot(msg2.astype(adjT_ref.dtype), adjT_ref[...],
                    preferred_element_type=jnp.float32)
      state = state + jnp.maximum(agg + bu_ref[r], 0.0) * valid
    # Per-graph pooling + encoder head.
    gs = jnp.dot(state, poolT_ref[...], preferred_element_type=jnp.float32)     # (S, G)
    out_ref[...] = jnp.dot(we_ref[...], gs,
                           preferred_element_type=jnp.float32) + be_ref[...]    # (2M, G)
  return kernel


# --------------------------------------------------------------------------------------
# Streamed path: grid = (streamed round, dst-column tile of A).
# --------------------------------------------------------------------------------------
def _streamed_kernel(state0_ref, adjT_ref, poolT_ref, valid_ref,
                     wm_ref, bm_ref, wu_ref, bu_ref, we_ref, be_ref,
                     out_ref, state_ref, msg2_ref, gs_ref):
  """state0_ref : (S, N_pad)   f32   analytic round-0 state (resident; fetched once)
     adjT_ref   : (N_pad, TN)  bf16  A_T[src, dst] column tile (edge counts)
     poolT_ref  : (TN, G)      f32   pooling rows for this dst tile
     valid_ref  : (1, TN)      f32   1.0 for real nodes, 0.0 for padding
     wm/bm/wu/bu: per-round weights, pre-sliced to rounds 1..R-1 in the wrapper
     we/be      : encoder head (resident)
     out_ref    : (2M, G)      f32   encoder output (transposed; split + exp in wrapper)
     state_ref  : (S, N_pad)   f32   persistent node state
     msg2_ref   : (S, N_pad)   bf16  persistent Wu-fused message (MXU operand)
     gs_ref     : (S, G)       f32   pooled graph-state accumulator (last round only)"""
  r = pl.program_id(0)
  t = pl.program_id(1)
  last_r = pl.num_programs(0) - 1
  last_t = pl.num_programs(1) - 1
  n_pad = state_ref.shape[1]
  tile_n = adjT_ref.shape[1]

  if tile_n == n_pad:              # single-tile: static full-width window
    col = slice(None)
  else:                            # lane-tile-aligned dynamic window
    col = pl.ds(pl.multiple_of(t * tile_n, _LANE), tile_n)

  @pl.when((r == 0) & (t == 0))
  def _init():
    state_ref[...] = state0_ref[...]
    gs_ref[...] = jnp.zeros_like(gs_ref)

  @pl.when(t == 0)
  def _per_round_message():
    # msg2 = Wu_r @ ReLU(Wm_r @ state + bm_r); bf16 cast for the big A matmul.
    msg = jnp.maximum(
        jnp.dot(wm_ref[0], state_ref[...], preferred_element_type=jnp.float32)
        + bm_ref[0], 0.0)
    msg2 = jnp.dot(wu_ref[0], msg, preferred_element_type=jnp.float32)
    msg2_ref[...] = msg2.astype(msg2_ref.dtype)

  # One fused MXU pass per dst tile (bf16 x bf16 -> f32 accumulation), pad columns zeroed.
  agg = jnp.dot(msg2_ref[...], adjT_ref[...], preferred_element_type=jnp.float32)
  upd = jnp.maximum(agg + bu_ref[0], 0.0) * valid_ref[...]
  new_state = state_ref[:, col] + upd
  state_ref[:, col] = new_state

  @pl.when(r == last_r)
  def _pool_tile():
    gs_ref[...] = gs_ref[...] + jnp.dot(new_state, poolT_ref[...],
                                        preferred_element_type=jnp.float32)

  @pl.when((r == last_r) & (t == last_t))
  def _finalize():
    out_ref[...] = jnp.dot(we_ref[...], gs_ref[...],
                           preferred_element_type=jnp.float32) + be_ref[...]


# --------------------------------------------------------------------------------------
# VMEM budgets (used both for path selection and for vmem_limit_bytes).
# --------------------------------------------------------------------------------------
def _resident_bytes(n_pad, state_dim, num_graphs):
  g_lanes = _round_up(max(num_graphs, 1), _LANE)
  return (n_pad * n_pad * 2                 # adjT bf16 (single-buffered: gridless call)
          + state_dim * n_pad * 4           # state0
          + n_pad * g_lanes * 4             # poolT (lane padded)
          + 8 * n_pad * 4                   # valid (sublane padded)
          + 6 * state_dim * n_pad * 4       # in-kernel transients (msg/msg2/agg/state)
          + 2 * (1 << 20))                  # weights, output, headroom


def _streamed_bytes(n_pad, tile_n, state_dim, num_graphs):
  g_lanes = _round_up(max(num_graphs, 1), _LANE)
  return (2 * n_pad * tile_n * 2            # double-buffered bf16 A tiles
          + 2 * tile_n * g_lanes * 4        # double-buffered poolT tiles
          + 2 * 8 * tile_n * 4              # double-buffered valid tiles
          + 2 * state_dim * n_pad * 4       # state0 input buffers
          + state_dim * n_pad * 4           # state scratch
          + state_dim * n_pad * 2           # msg2 scratch (bf16)
          + 4 * state_dim * tile_n * 4      # per-tile transients
          + 2 * (1 << 20))                  # weights, gs, output, headroom


# --------------------------------------------------------------------------------------
# Wrapper
# --------------------------------------------------------------------------------------
def gaussian_encoder_message_passing(x, edge_index, batch, params, *,
                                     num_rounds, latent_M, num_graphs,
                                     force_streamed=False, force_tile_n=None):
  """Builds the dense (transposed) adjacency / pooling operands, computes the analytic
  round-0 state, and dispatches to the resident or streamed Pallas kernel.
  Returns (mean, scale) of the per-graph encoder Normal."""
  del x  # forward() only uses x for new_zeros; node features are never read.
  assert num_rounds >= 1

  num_nodes = int(batch.shape[0])
  state_dim = int(params["wm"].shape[-1])
  two_m = int(params["we"].shape[0])
  assert two_m == 2 * latent_M

  vmem_cap = _vmem_capacity_bytes()

  # ---- path / tiling policy (generation-aware via physical VMEM capacity) ------------
  n_pad = _round_up(max(num_nodes, 1), _LANE)
  use_resident = (not force_streamed) and (
      _resident_bytes(n_pad, state_dim, num_graphs) <= int(0.8 * vmem_cap))
  if use_resident:
    tile_n = n_pad
    budget = _resident_bytes(n_pad, state_dim, num_graphs)
  else:
    assert num_rounds >= 2, "streamed path needs at least one post-round-0 round"
    tile_n = int(force_tile_n) if force_tile_n else 512
    while True:
      n_pad = _round_up(max(num_nodes, 1), tile_n)
      budget = _streamed_bytes(n_pad, tile_n, state_dim, num_graphs)
      if force_tile_n or budget <= int(0.8 * vmem_cap) or tile_n <= _LANE:
        break
      tile_n //= 2
  vmem_limit = int(min(vmem_cap, max(budget, 16 << 20)))   # clamp to physical VMEM
  num_tiles = n_pad // tile_n

  src = edge_index[0]
  dst = edge_index[1]

  # ---- dense operands (transposed, node axis on lanes) --------------------------------
  # TODO(synk): cache adjT/poolT/valid/deg across calls when the graph is static, and add
  #             an edge-list (scalar-prefetch) aggregation path for large sparse graphs
  #             instead of materializing/streaming the dense N^2 adjacency.
  # A_T[src, dst] = edge multiplicity, built in bf16 (exact for counts <= 256).
  adjT = jnp.zeros((n_pad, n_pad), jnp.bfloat16).at[src, dst].add(
      jnp.ones(src.shape, jnp.bfloat16))
  # poolT[n, g] = 1 iff batch[n] == g (padded rows stay zero).
  poolT = jnp.zeros((n_pad, num_graphs), jnp.float32).at[
      jnp.arange(num_nodes), batch].add(1.0)
  # valid mask keeps padded node columns exactly zero throughout.
  valid = jnp.zeros((1, n_pad), jnp.float32).at[0, :num_nodes].set(1.0)
  # In-degree per dst node (only used by the analytic round 0 below).
  deg = jnp.zeros((1, n_pad), jnp.float32).at[0, dst].add(1.0)

  # ---- analytic round 0 (exact f32): state == 0 => message == ReLU(bm0) per node ------
  relu = lambda v: jnp.maximum(v, 0.0)
  v0 = jnp.dot(params["wu"][0], relu(params["bm"][0]))            # (S, 1)
  state0 = relu(v0 * deg + params["bu"][0]) * valid               # (S, n_pad)

  if use_resident:
    out_t = pl.pallas_call(
        _make_resident_kernel(num_rounds),
        out_shape=jax.ShapeDtypeStruct((two_m, num_graphs), jnp.float32),
        compiler_params=pltpu.CompilerParams(vmem_limit_bytes=vmem_limit),
    )(state0, adjT, poolT, valid,
      params["wm"], params["bm"], params["wu"], params["bu"],
      params["we"], params["be"])
  else:
    # Weights for rounds 1..R-1 only (round 0 is folded into state0).
    wm1, bm1 = params["wm"][1:], params["bm"][1:]
    wu1, bu1 = params["wu"][1:], params["bu"][1:]
    grid_spec = pltpu.PrefetchScalarGridSpec(
        num_scalar_prefetch=0,
        grid=(num_rounds - 1, num_tiles),
        in_specs=[
            pl.BlockSpec((state_dim, n_pad), lambda r, t: (0, 0)),            # state0
            pl.BlockSpec((n_pad, tile_n), lambda r, t: (0, t)),               # A_T tile
            pl.BlockSpec((tile_n, num_graphs), lambda r, t: (t, 0)),          # poolT tile
            pl.BlockSpec((1, tile_n), lambda r, t: (0, t)),                   # valid tile
            pl.BlockSpec((1, state_dim, state_dim), lambda r, t: (r, 0, 0)),  # Wm[r+1]
            pl.BlockSpec((1, state_dim, 1), lambda r, t: (r, 0, 0)),          # bm[r+1]
            pl.BlockSpec((1, state_dim, state_dim), lambda r, t: (r, 0, 0)),  # Wu[r+1]
            pl.BlockSpec((1, state_dim, 1), lambda r, t: (r, 0, 0)),          # bu[r+1]
            pl.BlockSpec((two_m, state_dim), lambda r, t: (0, 0)),            # We
            pl.BlockSpec((two_m, 1), lambda r, t: (0, 0)),                    # be
        ],
        out_specs=pl.BlockSpec((two_m, num_graphs), lambda r, t: (0, 0)),
        scratch_shapes=[
            pltpu.VMEM((state_dim, n_pad), jnp.float32),       # state (persistent)
            pltpu.VMEM((state_dim, n_pad), jnp.bfloat16),      # Wu-fused message
            pltpu.VMEM((state_dim, num_graphs), jnp.float32),  # pooled graph state
        ],
    )
    out_t = pl.pallas_call(
        _streamed_kernel,
        out_shape=jax.ShapeDtypeStruct((two_m, num_graphs), jnp.float32),
        grid_spec=grid_spec,
        compiler_params=pltpu.CompilerParams(
            # TODO(synk): on v7x, once A is resident-per-core and MXU-bound, shard the
            #             dst-tile axis across the two TensorCores with a per-round state
            #             exchange via VMEM_SHARED/CMEM.
            # TODO(synk): on v5e/v6e, an int8 A + per-round message scale would halve the
            #             streamed HBM bytes (not applicable on v7x: no int8 MXU).
            dimension_semantics=("arbitrary", "arbitrary"),
            vmem_limit_bytes=vmem_limit),
    )(state0, adjT, poolT, valid, wm1, bm1, wu1, bu1, params["we"], params["be"])

  out = out_t.T                                   # (G, 2M)
  mean = out[:, :latent_M]
  scale = jnp.exp(out[:, latent_M:])
  return mean, scale


# --------------------------------------------------------------------------------------
# Parameter init (PyTorch nn.Linear-style) and pure-JAX reference.
# --------------------------------------------------------------------------------------
def init_params(key, node_feature_dim, state_dim, num_rounds, latent_M):
  """PyTorch nn.Linear init (uniform +/- 1/sqrt(fan_in)); weights in torch (out, in) layout
  so the kernel's feature-major matmuls use them directly."""
  keys = jax.random.split(key, 4)

  def lin(k, fan_in, fan_out):
    bound = 1.0 / (fan_in ** 0.5)
    kw, kb = jax.random.split(k)
    w = jax.random.uniform(kw, (fan_out, fan_in), jnp.float32, -bound, bound)
    b = jax.random.uniform(kb, (fan_out, 1), jnp.float32, -bound, bound)
    return w, b

  # input_net exists in __init__ but forward() never uses it; created for parity only.
  _w_in, _b_in = lin(keys[0], node_feature_dim, state_dim)

  wm, bm, wu, bu = [], [], [], []
  for r in range(num_rounds):
    w, b = lin(jax.random.fold_in(keys[1], r), state_dim, state_dim)
    wm.append(w); bm.append(b)
    w, b = lin(jax.random.fold_in(keys[2], r), state_dim, state_dim)
    wu.append(w); bu.append(b)

  we, be = lin(keys[3], state_dim, 2 * latent_M)

  return {"wm": jnp.stack(wm), "bm": jnp.stack(bm),   # (R,S,S), (R,S,1)
          "wu": jnp.stack(wu), "bu": jnp.stack(bu),
          "we": we, "be": be}                         # (2M,S), (2M,1)


def _reference(edge_index, batch, params, num_rounds, latent_M, num_graphs):
  """Pure-JAX fp32 reference mirroring the PyTorch forward()."""
  num_nodes = batch.shape[0]
  state_dim = params["wm"].shape[-1]
  state = jnp.zeros((num_nodes, state_dim), jnp.float32)
  for r in range(num_rounds):
    message = jax.nn.relu(state @ params["wm"][r].T + params["bm"][r][:, 0])
    agg = jnp.zeros((num_nodes, state_dim), jnp.float32)
    agg = agg.at[edge_index[1]].add(message[edge_index[0]])
    state = state + jax.nn.relu(agg @ params["wu"][r].T + params["bu"][r][:, 0])
  graph_state = jnp.zeros((num_graphs, state_dim), jnp.float32).at[batch].add(state)
  out = graph_state @ params["we"].T + params["be"][:, 0]
  return out[:, :latent_M], jnp.exp(out[:, latent_M:])


if __name__ == "__main__":
  node_feature_dim = 4
  state_dim = 32
  num_rounds = 3
  latent_M = 8

  key = jax.random.PRNGKey(0)
  k_params, k_x = jax.random.split(key)
  params = init_params(k_params, node_feature_dim, state_dim, num_rounds, latent_M)

  def ring_graphs(num_graphs, nodes_per_graph):
    batch = jnp.repeat(jnp.arange(num_graphs, dtype=jnp.int32), nodes_per_graph)
    srcs, dsts = [], []
    for g in range(num_graphs):
      base = g * nodes_per_graph
      for i in range(nodes_per_graph):
        a = base + i
        b = base + (i + 1) % nodes_per_graph
        srcs += [a, b]
        dsts += [b, a]
    return jnp.array([srcs, dsts], dtype=jnp.int32), batch

  # ---- small graph: exercises the resident (gridless, single-buffered) path ----------
  num_graphs = 2
  edge_index, batch = ring_graphs(num_graphs, 8)                   # 16 nodes
  x = jax.random.normal(k_x, (batch.shape[0], node_feature_dim), jnp.float32)
  mean, scale = gaussian_encoder_message_passing(
      x, edge_index, batch, params,
      num_rounds=num_rounds, latent_M=latent_M, num_graphs=num_graphs)
  jax.block_until_ready((mean, scale))
  ref_mean, ref_scale = _reference(edge_index, batch, params, num_rounds,
                                   latent_M, num_graphs)
  assert mean.shape == (num_graphs, latent_M) and scale.shape == (num_graphs, latent_M)
  assert bool(jnp.all(jnp.isfinite(mean))) and bool(jnp.all(jnp.isfinite(scale)))
  # bf16 message/adjacency MXU operands (f32 accumulation) vs fp32 reference: O(1e-3) error.
  assert jnp.allclose(mean, ref_mean, rtol=5e-2, atol=5e-2), (mean, ref_mean)
  assert jnp.allclose(scale, ref_scale, rtol=5e-2, atol=5e-2), (scale, ref_scale)

  # ---- larger graph with streaming forced: exercises the tiled (grid) path -----------
  num_graphs_s = 20
  edge_index_s, batch_s = ring_graphs(num_graphs_s, 16)            # 320 nodes -> 3 tiles
  x_s = jnp.zeros((batch_s.shape[0], node_feature_dim), jnp.float32)
  mean_s, scale_s = gaussian_encoder_message_passing(
      x_s, edge_index_s, batch_s, params,
      num_rounds=num_rounds, latent_M=latent_M, num_graphs=num_graphs_s,
      force_streamed=True, force_tile_n=128)
  jax.block_until_ready((mean_s, scale_s))
  ref_mean_s, ref_scale_s = _reference(edge_index_s, batch_s, params, num_rounds,
                                       latent_M, num_graphs_s)
  assert mean_s.shape == (num_graphs_s, latent_M)
  assert bool(jnp.all(jnp.isfinite(mean_s))) and bool(jnp.all(jnp.isfinite(scale_s)))
  assert jnp.allclose(mean_s, ref_mean_s, rtol=5e-2, atol=5e-2), (mean_s, ref_mean_s)
  # exp() turns absolute log_std error into relative scale error -> compare in log space.
  assert jnp.allclose(jnp.log(scale_s), jnp.log(ref_scale_s), rtol=5e-2, atol=5e-2)

  print("KERNEL_OK")
</pallas_src>

<mosaic_0001>
module attributes {stable_mosaic.version = 11 : i64} {
  func.func @kernel(%arg0: memref<32x128xf32, #tpu.memory_space<vmem>>, %arg1: memref<128x128xbf16, #tpu.memory_space<vmem>>, %arg2: memref<128x2xf32, #tpu.memory_space<vmem>>, %arg3: memref<1x128xf32, #tpu.memory_space<vmem>>, %arg4: memref<3x32x32xf32, #tpu.memory_space<vmem>>, %arg5: memref<3x32x1xf32, #tpu.memory_space<vmem>>, %arg6: memref<3x32x32xf32, #tpu.memory_space<vmem>>, %arg7: memref<3x32x1xf32, #tpu.memory_space<vmem>>, %arg8: memref<16x32xf32, #tpu.memory_space<vmem>>, %arg9: memref<16x1xf32, #tpu.memory_space<vmem>>, %arg10: memref<16x2xf32, #tpu.memory_space<vmem>>) attributes {dimension_semantics = [], scalar_prefetch = 0 : i64, scratch_operands = 0 : i64, tpu.core_type = #tpu.core_type<tc>} {
    %c0 = arith.constant 0 : index
    %c0_0 = arith.constant 0 : index
    %0 = vector.load %arg0[%c0, %c0_0] : memref<32x128xf32, #tpu.memory_space<vmem>>, vector<32x128xf32>
    %c0_1 = arith.constant 0 : index
    %c0_2 = arith.constant 0 : index
    %1 = vector.load %arg3[%c0_1, %c0_2] : memref<1x128xf32, #tpu.memory_space<vmem>>, vector<1x128xf32>
    %c1 = arith.constant 1 : index
    %c0_3 = arith.constant 0 : index
    %c0_4 = arith.constant 0 : index
    %2 = vector.load %arg4[%c1, %c0_3, %c0_4] : memref<3x32x32xf32, #tpu.memory_space<vmem>>, vector<1x32x32xf32>
    %3 = vector.shape_cast %2 : vector<1x32x32xf32> to vector<32x32xf32>
    %cst = arith.constant dense<0.000000e+00> : vector<32x128xf32>
    %4 = tpu.matmul %3, %0, %cst {dimension_numbers = #tpu.dot_dimension_numbers<[1], [0], [0], [1], [0, 0, 1, 1], [], []>} : vector<32x32xf32>, vector<32x128xf32>, vector<32x128xf32> -> vector<32x128xf32>
    %c1_5 = arith.constant 1 : index
    %c0_6 = arith.constant 0 : index
    %c0_7 = arith.constant 0 : index
    %5 = vector.load %arg5[%c1_5, %c0_6, %c0_7] : memref<3x32x1xf32, #tpu.memory_space<vmem>>, vector<1x32x1xf32>
    %6 = vector.shape_cast %5 : vector<1x32x1xf32> to vector<32x1xf32>
    %7 = vector.broadcast %6 : vector<32x1xf32> to vector<32x128xf32>
    %8 = arith.addf %4, %7 : vector<32x128xf32>
    %cst_8 = arith.constant 0.000000e+00 : f32
    %9 = vector.broadcast %cst_8 : f32 to vector<32x128xf32>
    %10 = arith.maximumf %8, %9 : vector<32x128xf32>
    %c1_9 = arith.constant 1 : index
    %c0_10 = arith.constant 0 : index
    %c0_11 = arith.constant 0 : index
    %11 = vector.load %arg6[%c1_9, %c0_10, %c0_11] : memref<3x32x32xf32, #tpu.memory_space<vmem>>, vector<1x32x32xf32>
    %12 = vector.shape_cast %11 : vector<1x32x32xf32> to vector<32x32xf32>
    %cst_12 = arith.constant dense<0.000000e+00> : vector<32x128xf32>
    %13 = tpu.matmul %12, %10, %cst_12 {dimension_numbers = #tpu.dot_dimension_numbers<[1], [0], [0], [1], [0, 0, 1, 1], [], []>} : vector<32x32xf32>, vector<32x128xf32>, vector<32x128xf32> -> vector<32x128xf32>
    %14 = arith.truncf %13 : vector<32x128xf32> to vector<32x128xbf16>
    %c0_13 = arith.constant 0 : index
    %c0_14 = arith.constant 0 : index
    %15 = vector.load %arg1[%c0_13, %c0_14] : memref<128x128xbf16, #tpu.memory_space<vmem>>, vector<128x128xbf16>
    %cst_15 = arith.constant dense<0.000000e+00> : vector<32x128xf32>
    %16 = tpu.matmul %14, %15, %cst_15 {dimension_numbers = #tpu.dot_dimension_numbers<[1], [0], [0], [1], [0, 0, 1, 1], [], []>} : vector<32x128xbf16>, vector<128x128xbf16>, vector<32x128xf32> -> vector<32x128xf32>
    %c1_16 = arith.constant 1 : index
    %c0_17 = arith.constant 0 : index
    %c0_18 = arith.constant 0 : index
    %17 = vector.load %arg7[%c1_16, %c0_17, %c0_18] : memref<3x32x1xf32, #tpu.memory_space<vmem>>, vector<1x32x1xf32>
    %18 = vector.shape_cast %17 : vector<1x32x1xf32> to vector<32x1xf32>
    %19 = vector.broadcast %18 : vector<32x1xf32> to vector<32x128xf32>
    %20 = arith.addf %16, %19 : vector<32x128xf32>
    %cst_19 = arith.constant 0.000000e+00 : f32
    %21 = vector.broadcast %cst_19 : f32 to vector<32x128xf32>
    %22 = arith.maximumf %20, %21 : vector<32x128xf32>
    %23 = vector.broadcast %1 : vector<1x128xf32> to vector<32x128xf32>
    %24 = arith.mulf %22, %23 : vector<32x128xf32>
    %25 = arith.addf %0, %24 : vector<32x128xf32>
    %c2 = arith.constant 2 : index
    %c0_20 = arith.constant 0 : index
    %c0_21 = arith.constant 0 : index
    %26 = vector.load %arg4[%c2, %c0_20, %c0_21] : memref<3x32x32xf32, #tpu.memory_space<vmem>>, vector<1x32x32xf32>
    %27 = vector.shape_cast %26 : vector<1x32x32xf32> to vector<32x32xf32>
    %cst_22 = arith.constant dense<0.000000e+00> : vector<32x128xf32>
    %28 = tpu.matmul %27, %25, %cst_22 {dimension_numbers = #tpu.dot_dimension_numbers<[1], [0], [0], [1], [0, 0, 1, 1], [], []>} : vector<32x32xf32>, vector<32x128xf32>, vector<32x128xf32> -> vector<32x128xf32>
    %c2_23 = arith.constant 2 : index
    %c0_24 = arith.constant 0 : index
    %c0_25 = arith.constant 0 : index
    %29 = vector.load %arg5[%c2_23, %c0_24, %c0_25] : memref<3x32x1xf32, #tpu.memory_space<vmem>>, vector<1x32x1xf32>
    %30 = vector.shape_cast %29 : vector<1x32x1xf32> to vector<32x1xf32>
    %31 = vector.broadcast %30 : vector<32x1xf32> to vector<32x128xf32>
    %32 = arith.addf %28, %31 : vector<32x128xf32>
    %cst_26 = arith.constant 0.000000e+00 : f32
    %33 = vector.broadcast %cst_26 : f32 to vector<32x128xf32>
    %34 = arith.maximumf %32, %33 : vector<32x128xf32>
    %c2_27 = arith.constant 2 : index
    %c0_28 = arith.constant 0 : index
    %c0_29 = arith.constant 0 : index
    %35 = vector.load %arg6[%c2_27, %c0_28, %c0_29] : memref<3x32x32xf32, #tpu.memory_space<vmem>>, vector<1x32x32xf32>
    %36 = vector.shape_cast %35 : vector<1x32x32xf32> to vector<32x32xf32>
    %cst_30 = arith.constant dense<0.000000e+00> : vector<32x128xf32>
    %37 = tpu.matmul %36, %34, %cst_30 {dimension_numbers = #tpu.dot_dimension_numbers<[1], [0], [0], [1], [0, 0, 1, 1], [], []>} : vector<32x32xf32>, vector<32x128xf32>, vector<32x128xf32> -> vector<32x128xf32>
    %38 = arith.truncf %37 : vector<32x128xf32> to vector<32x128xbf16>
    %c0_31 = arith.constant 0 : index
    %c0_32 = arith.constant 0 : index
    %39 = vector.load %arg1[%c0_31, %c0_32] : memref<128x128xbf16, #tpu.memory_space<vmem>>, vector<128x128xbf16>
    %cst_33 = arith.constant dense<0.000000e+00> : vector<32x128xf32>
    %40 = tpu.matmul %38, %39, %cst_33 {dimension_numbers = #tpu.dot_dimension_numbers<[1], [0], [0], [1], [0, 0, 1, 1], [], []>} : vector<32x128xbf16>, vector<128x128xbf16>, vector<32x128xf32> -> vector<32x128xf32>
    %c2_34 = arith.constant 2 : index
    %c0_35 = arith.constant 0 : index
    %c0_36 = arith.constant 0 : index
    %41 = vector.load %arg7[%c2_34, %c0_35, %c0_36] : memref<3x32x1xf32, #tpu.memory_space<vmem>>, vector<1x32x1xf32>
    %42 = vector.shape_cast %41 : vector<1x32x1xf32> to vector<32x1xf32>
    %43 = vector.broadcast %42 : vector<32x1xf32> to vector<32x128xf32>
    %44 = arith.addf %40, %43 : vector<32x128xf32>
    %cst_37 = arith.constant 0.000000e+00 : f32
    %45 = vector.broadcast %cst_37 : f32 to vector<32x128xf32>
    %46 = arith.maximumf %44, %45 : vector<32x128xf32>
    %47 = vector.broadcast %1 : vector<1x128xf32> to vector<32x128xf32>
    %48 = arith.mulf %46, %47 : vector<32x128xf32>
    %49 = arith.addf %25, %48 : vector<32x128xf32>
    %c0_38 = arith.constant 0 : index
    %c0_39 = arith.constant 0 : index
    %50 = vector.load %arg2[%c0_38, %c0_39] : memref<128x2xf32, #tpu.memory_space<vmem>>, vector<128x2xf32>
    %cst_40 = arith.constant dense<0.000000e+00> : vector<32x2xf32>
    %51 = tpu.matmul %49, %50, %cst_40 {dimension_numbers = #tpu.dot_dimension_numbers<[1], [0], [0], [1], [0, 0, 1, 1], [], []>} : vector<32x128xf32>, vector<128x2xf32>, vector<32x2xf32> -> vector<32x2xf32>
    %c0_41 = arith.constant 0 : index
    %c0_42 = arith.constant 0 : index
    %52 = vector.load %arg8[%c0_41, %c0_42] : memref<16x32xf32, #tpu.memory_space<vmem>>, vector<16x32xf32>
    %cst_43 = arith.constant dense<0.000000e+00> : vector<16x2xf32>
    %53 = tpu.matmul %52, %51, %cst_43 {dimension_numbers = #tpu.dot_dimension_numbers<[1], [0], [0], [1], [0, 0, 1, 1], [], []>} : vector<16x32xf32>, vector<32x2xf32>, vector<16x2xf32> -> vector<16x2xf32>
    %c0_44 = arith.constant 0 : index
    %c0_45 = arith.constant 0 : index
    %54 = vector.load %arg9[%c0_44, %c0_45] : memref<16x1xf32, #tpu.memory_space<vmem>>, vector<16x1xf32>
    %55 = vector.broadcast %54 : vector<16x1xf32> to vector<16x2xf32>
    %56 = arith.addf %53, %55 : vector<16x2xf32>
    %c0_46 = arith.constant 0 : index
    %c0_47 = arith.constant 0 : index
    %57 = vector.load %arg10[%c0_46, %c0_47] : memref<16x2xf32, #tpu.memory_space<vmem>>, vector<16x2xf32>
    tpu.vector_store %arg10[%c0_46, %c0_47], %56 {strides = array<i32>} : memref<16x2xf32, #tpu.memory_space<vmem>>, vector<16x2xf32>,
    return
  }
}

</mosaic_0001>

<llo_original>
// kernel: tpu_custom_call.1
$region0: #{tpu_custom_call.1}
  #allocation0 [shape = 'u32[]', space=smem, size = 0x4, offset = 0x4, fixed_abs, tag = 'smem constant byte address 0x4 - core index']
  #allocation1 [shape = 'u32[144,128]{1,0:T(1,128)}', space=vmem, size = 0x12000, scoped, tag = 'internal scratch']
  %s0 = inlined_call_operand.vmem [shape: f32[32,128], index: 0, kind: input, shape index: {}]
  %s1 = inlined_call_operand.vmem [shape: bf16[128,128], index: 1, kind: input, shape index: {}]
  %s2 = inlined_call_operand.vmem [shape: f32[128,2], index: 2, kind: input, shape index: {}]
  %s3 = inlined_call_operand.vmem [shape: f32[1,128], index: 3, kind: input, shape index: {}]
  %s4 = inlined_call_operand.vmem [shape: f32[3,32,32], index: 4, kind: input, shape index: {}]
  %s5 = inlined_call_operand.vmem [shape: f32[3,32,1], index: 5, kind: input, shape index: {}]
  %s6 = inlined_call_operand.vmem [shape: f32[3,32,32], index: 6, kind: input, shape index: {}]
  %s7 = inlined_call_operand.vmem [shape: f32[3,32,1], index: 7, kind: input, shape index: {}]
  %s8 = inlined_call_operand.vmem [shape: f32[16,32], index: 8, kind: input, shape index: {}]
  %s9 = inlined_call_operand.vmem [shape: f32[16,1], index: 9, kind: input, shape index: {}]
  %s10 = inlined_call_operand.vmem [shape: f32[16,2], index: 10, kind: output, shape index: {}]
  %s11 = sld [smem:[#allocation0]]
  $region50: #{tpu_custom_call.1} parent=0
    _
  %s13 = ssub.s32 1, %s11
  %s14 = scalar_select 0, %s13, %s11
  // Predicated region
  $region2: #{tpu_custom_call.1} parent=0 // pred_check
    _
  $region3: #{tpu_custom_call.1} parent=0 // pred_check_branch
    %16 = sbr.rel (0) target = $region5
  $region4: #{tpu_custom_call.1} parent=0 // pred_region
    _
  $region5: #{tpu_custom_call.1} parent=0 // pred_fallthru
    _
  // Predicated region
  $region6: #{tpu_custom_call.1} parent=0 // pred_check
    _
  $region7: #{tpu_custom_call.1} parent=0 // pred_check_branch
    %18 = sbr.rel (0) target = $region9
  $region8: #{tpu_custom_call.1} parent=0 // pred_region
    _
  $region9: #{tpu_custom_call.1} parent=0 // pred_fallthru
    _
  // Predicated region
  $region10: #{tpu_custom_call.1} parent=0 // pred_check
    _
  $region11: #{tpu_custom_call.1} parent=0 // pred_check_branch
    %20 = sbr.rel (0) target = $region13
  $region12: #{tpu_custom_call.1} parent=0 // pred_region
    _
  $region13: #{tpu_custom_call.1} parent=0 // pred_fallthru
    _
  // Predicated region
  $region14: #{tpu_custom_call.1} parent=0 // pred_check
    _
  $region15: #{tpu_custom_call.1} parent=0 // pred_check_branch
    %22 = sbr.rel (0) target = $region17
  $region16: #{tpu_custom_call.1} parent=0 // pred_region
    _
  $region17: #{tpu_custom_call.1} parent=0 // pred_fallthru
    _
  // Predicated region
  $region18: #{tpu_custom_call.1} parent=0 // pred_check
    _
  $region19: #{tpu_custom_call.1} parent=0 // pred_check_branch
    %24 = sbr.rel (0) target = $region21
  $region20: #{tpu_custom_call.1} parent=0 // pred_region
    _
  $region21: #{tpu_custom_call.1} parent=0 // pred_fallthru
    _
  // Predicated region
  $region22: #{tpu_custom_call.1} parent=0 // pred_check
    _
  $region23: #{tpu_custom_call.1} parent=0 // pred_check_branch
    %26 = sbr.rel (0) target = $region25
  $region24: #{tpu_custom_call.1} parent=0 // pred_region
    _
  $region25: #{tpu_custom_call.1} parent=0 // pred_fallthru
    _
  // Predicated region
  $region26: #{tpu_custom_call.1} parent=0 // pred_check
    _
  $region27: #{tpu_custom_call.1} parent=0 // pred_check_branch
    %28 = sbr.rel (0) target = $region29
  $region28: #{tpu_custom_call.1} parent=0 // pred_region
    _
  $region29: #{tpu_custom_call.1} parent=0 // pred_fallthru
    _
  // Predicated region
  $region30: #{tpu_custom_call.1} parent=0 // pred_check
    _
  $region31: #{tpu_custom_call.1} parent=0 // pred_check_branch
    %30 = sbr.rel (0) target = $region33
  $region32: #{tpu_custom_call.1} parent=0 // pred_region
    _
  $region33: #{tpu_custom_call.1} parent=0 // pred_fallthru
    _
  // Predicated region
  $region34: #{tpu_custom_call.1} parent=0 // pred_check
    _
  $region35: #{tpu_custom_call.1} parent=0 // pred_check_branch
    %32 = sbr.rel (0) target = $region37
  $region36: #{tpu_custom_call.1} parent=0 // pred_region
    _
  $region37: #{tpu_custom_call.1} parent=0 // pred_fallthru
    _
  // Predicated region
  $region38: #{tpu_custom_call.1} parent=0 // pred_check
    _
  $region39: #{tpu_custom_call.1} parent=0 // pred_check_branch
    %34 = sbr.rel (0) target = $region41
  $region40: #{tpu_custom_call.1} parent=0 // pred_region
    _
  $region41: #{tpu_custom_call.1} parent=0 // pred_fallthru
    _
  %v36 = vld [vmem:[%s0] sm:$0xff]
  %v37 = vld [vmem:[%s0 + $0x8] sm:$0xff]
  %v38 = vld [vmem:[%s0 + $0x10] sm:$0xff]
  %v39 = vld [vmem:[%s0 + $0x18] sm:$0xff]
  %v40 = vld [vmem:[%s3] sm:$0x1]
  %s41 = scalar_lea.vmem %s4, 32
  %v42 = vld [vmem:[%s41] sm:$0xff]
  %v43 = vld [vmem:[%s41 + $0x8] sm:$0xff]
  %v44 = vld [vmem:[%s41 + $0x10] sm:$0xff]
  %v45 = vld [vmem:[%s41 + $0x18] sm:$0xff]
  %s46 = scalar_lea.vmem %s5, 32
  %v47 = vld [vmem:[%s46] sm:$0xff]
  %v48 = vld [vmem:[%s46 + $0x8] sm:$0xff]
  %v49 = vld [vmem:[%s46 + $0x10] sm:$0xff]
  %v50 = vld [vmem:[%s46 + $0x18] sm:$0xff]
  %52 = vset.pattern.permute.xlu0 0
  %53 = vperm.xlu0 %52, %v47
  %v54 = vpop.permute.xlu0 %53
  %57 = vset.pattern.permute.xlu0 0
  %58 = vperm.xlu0 %57, %v48
  %v59 = vpop.permute.xlu0 %58
  %62 = vset.pattern.permute.xlu0 0
  %63 = vperm.xlu0 %62, %v49
  %v64 = vpop.permute.xlu0 %63
  %67 = vset.pattern.permute.xlu0 0
  %68 = vperm.xlu0 %67, %v50
  %v69 = vpop.permute.xlu0 %68
  %vm71 = vcmask 261120
  %v73 = vsel %vm71, %v42, 0
  %v76 = vsel %vm71, %v43, 0
  %v79 = vsel %vm71, %v44, 0
  %v82 = vsel %vm71, %v45, 0
  %84 = vmatprep.subr.mxu0 0.0
  %85 = vmatpush1.msra.mxu0 %v36
  %86 = vmatprep.subr.mxu0 0.0
  %87 = vmatpush1.msra.mxu0 %v37
  %88 = vmatprep.subr.mxu0 0.0
  %89 = vmatpush1.msra.mxu0 %v38
  %90 = vmatprep.subr.mxu0 0.0
  %91 = vmatpush1.msra.mxu0 %v39
  %92 = vmatprep.subr.mxu0 0.0
  %93 = vmatpush1.msra.mxu0 0.0
  %94 = vmatprep.subr.mxu0 0.0
  %95 = vmatpush1.msra.mxu0 0.0
  %96 = vmatprep.subr.mxu0 0.0
  %97 = vmatpush1.msra.mxu0 0.0
  %98 = vmatprep.subr.mxu0 0.0
  %99 = vmatpush1.msra.mxu0 0.0
  %100 = vmatprep.subr.mxu0 0.0
  %101 = vmatpush1.msra.mxu0 0.0
  %102 = vmatprep.subr.mxu0 0.0
  %103 = vmatpush1.msra.mxu0 0.0
  %104 = vmatprep.subr.mxu0 0.0
  %105 = vmatpush1.msra.mxu0 0.0
  %106 = vmatprep.subr.mxu0 0.0
  %107 = vmatpush1.msra.mxu0 0.0
  %108 = vmatprep.subr.mxu0 0.0
  %109 = vmatpush1.msra.mxu0 0.0
  %110 = vmatprep.subr.mxu0 0.0
  %111 = vmatpush1.msra.mxu0 0.0
  %112 = vmatprep.subr.mxu0 0.0
  %113 = vmatpush1.msra.mxu0 0.0
  %114 = vmatprep.subr.mxu0 0.0
  %115 = vmatpush1.msra.mxu0 0.0
  %116 = vmatprep.subr.mxu0 0.0
  %117 = vmatpush1.msra.mxu0 0.0
  %118 = vmatprep.subr.mxu0 0.0
  %119 = vmatpush1.msra.mxu0 0.0
  %120 = vmatprep.subr.mxu0 0.0
  %121 = vmatpush1.msra.mxu0 0.0
  %122 = vmatprep.subr.mxu0 0.0
  %123 = vmatpush1.msra.mxu0 0.0
  %124 = vmatprep.subr.mxu0 0.0
  %125 = vmatpush1.msra.mxu0 0.0
  %126 = vmatprep.subr.mxu0 0.0
  %127 = vmatpush1.msra.mxu0 0.0
  %128 = vmatprep.subr.mxu0 0.0
  %129 = vmatpush1.msra.mxu0 0.0
  %130 = vmatprep.subr.mxu0 0.0
  %131 = vmatpush1.msra.mxu0 0.0
  %132 = vmatprep.subr.mxu0 0.0
  %133 = vmatpush1.msra.mxu0 0.0
  %134 = vmatprep.subr.mxu0 0.0
  %135 = vmatpush1.msra.mxu0 0.0
  %136 = vmatprep.subr.mxu0 0.0
  %137 = vmatpush1.msra.mxu0 0.0
  %138 = vmatprep.subr.mxu0 0.0
  %139 = vmatpush1.msra.mxu0 0.0
  %140 = vmatprep.subr.mxu0 0.0
  %141 = vmatpush1.msra.mxu0 0.0
  %142 = vmatprep.subr.mxu0 0.0
  %143 = vmatpush1.msra.mxu0 0.0
  %144 = vmatprep.subr.mxu0 0.0
  %145 = vmatpush1.msra.mxu0 0.0
  %146 = vmatprep.subr.mxu0 0.0
  %147 = vmatpush1.msra.mxu0 0.0
  %148 = vmatprep.mubr.f32.mxu0 0.0
  %149 = vmatmul.mubr.f32.gmra.mrb[0].mxu0 %v73
  %v150 = vpop.f32.mrb[0].mxu0
  %v151 = vadd.f32 %v54, %v150
  %v152 = vpop.f32.mrb[0].mxu0
  %153 = vmatprep.mubr.f32.mxu0 0.0
  %154 = vmatmul.mubr.f32.gmra.mrb[0].mxu0 %v76
  %v155 = vpop.f32.mrb[0].mxu0
  %v156 = vadd.f32 %v59, %v155
  %v157 = vpop.f32.mrb[0].mxu0
  %158 = vmatprep.mubr.f32.mxu0 0.0
  %159 = vmatmul.mubr.f32.gmra.mrb[0].mxu0 %v79
  %v160 = vpop.f32.mrb[0].mxu0
  %v161 = vadd.f32 %v64, %v160
  %v162 = vpop.f32.mrb[0].mxu0
  %163 = vmatprep.mubr.f32.mxu0 0.0
  %164 = vmatmul.mubr.f32.gmra.mrb[0].mxu0 %v82
  %v165 = vpop.f32.mrb[0].mxu0
  %v166 = vadd.f32 %v69, %v165
  %v167 = vpop.f32.mrb[0].mxu0
  %168 = vdwg.mxu0
  %v169 = vmax.f32 %v151, 0.0
  %v170 = vmax.f32 %v156, 0.0
  %v171 = vmax.f32 %v161, 0.0
  %v172 = vmax.f32 %v166, 0.0
  %s173 = scalar_lea.vmem %s6, 32
  %v174 = vld [vmem:[%s173] sm:$0xff]
  %v175 = vld [vmem:[%s173 + $0x8] sm:$0xff]
  %v176 = vld [vmem:[%s173 + $0x10] sm:$0xff]
  %v177 = vld [vmem:[%s173 + $0x18] sm:$0xff]
  %v179 = vsel %vm71, %v174, 0
  %v182 = vsel %vm71, %v175, 0
  %v185 = vsel %vm71, %v176, 0
  %v188 = vsel %vm71, %v177, 0
  %190 = vmatprep.subr.mxu0 0.0
  %191 = vmatpush1.msra.mxu0 %v169
  %192 = vmatprep.subr.mxu0 0.0
  %193 = vmatpush1.msra.mxu0 %v170
  %194 = vmatprep.subr.mxu0 0.0
  %195 = vmatpush1.msra.mxu0 %v171
  %196 = vmatprep.subr.mxu0 0.0
  %197 = vmatpush1.msra.mxu0 %v172
  %198 = vmatprep.subr.mxu0 0.0
  %199 = vmatpush1.msra.mxu0 0.0
  %200 = vmatprep.subr.mxu0 0.0
  %201 = vmatpush1.msra.mxu0 0.0
  %202 = vmatprep.subr.mxu0 0.0
  %203 = vmatpush1.msra.mxu0 0.0
  %204 = vmatprep.subr.mxu0 0.0
  %205 = vmatpush1.msra.mxu0 0.0
  %206 = vmatprep.subr.mxu0 0.0
  %207 = vmatpush1.msra.mxu0 0.0
  %208 = vmatprep.subr.mxu0 0.0
  %209 = vmatpush1.msra.mxu0 0.0
  %210 = vmatprep.subr.mxu0 0.0
  %211 = vmatpush1.msra.mxu0 0.0
  %212 = vmatprep.subr.mxu0 0.0
  %213 = vmatpush1.msra.mxu0 0.0
  %214 = vmatprep.subr.mxu0 0.0
  %215 = vmatpush1.msra.mxu0 0.0
  %216 = vmatprep.subr.mxu0 0.0
  %217 = vmatpush1.msra.mxu0 0.0
  %218 = vmatprep.subr.mxu0 0.0
  %219 = vmatpush1.msra.mxu0 0.0
  %220 = vmatprep.subr.mxu0 0.0
  %221 = vmatpush1.msra.mxu0 0.0
  %222 = vmatprep.subr.mxu0 0.0
  %223 = vmatpush1.msra.mxu0 0.0
  %224 = vmatprep.subr.mxu0 0.0
  %225 = vmatpush1.msra.mxu0 0.0
  %226 = vmatprep.subr.mxu0 0.0
  %227 = vmatpush1.msra.mxu0 0.0
  %228 = vmatprep.subr.mxu0 0.0
  %229 = vmatpush1.msra.mxu0 0.0
  %230 = vmatprep.subr.mxu0 0.0
  %231 = vmatpush1.msra.mxu0 0.0
  %232 = vmatprep.subr.mxu0 0.0
  %233 = vmatpush1.msra.mxu0 0.0
  %234 = vmatprep.subr.mxu0 0.0
  %235 = vmatpush1.msra.mxu0 0.0
  %236 = vmatprep.subr.mxu0 0.0
  %237 = vmatpush1.msra.mxu0 0.0
  %238 = vmatprep.subr.mxu0 0.0
  %239 = vmatpush1.msra.mxu0 0.0
  %240 = vmatprep.subr.mxu0 0.0
  %241 = vmatpush1.msra.mxu0 0.0
  %242 = vmatprep.subr.mxu0 0.0
  %243 = vmatpush1.msra.mxu0 0.0
  %244 = vmatprep.subr.mxu0 0.0
  %245 = vmatpush1.msra.mxu0 0.0
  %246 = vmatprep.subr.mxu0 0.0
  %247 = vmatpush1.msra.mxu0 0.0
  %248 = vmatprep.subr.mxu0 0.0
  %249 = vmatpush1.msra.mxu0 0.0
  %250 = vmatprep.subr.mxu0 0.0
  %251 = vmatpush1.msra.mxu0 0.0
  %252 = vmatprep.subr.mxu0 0.0
  %253 = vmatpush1.msra.mxu0 0.0
  %254 = vmatprep.mubr.f32.mxu0 0.0
  %255 = vmatmul.mubr.f32.gmra.mrb[0].mxu0 %v179
  %v256 = vpop.f32.mrb[0].mxu0
  %v257 = vadd.f32 0.0, %v256
  %v258 = vpop.f32.mrb[0].mxu0
  %259 = vmatprep.mubr.f32.mxu0 0.0
  %260 = vmatmul.mubr.f32.gmra.mrb[0].mxu0 %v182
  %v261 = vpop.f32.mrb[0].mxu0
  %v262 = vadd.f32 0.0, %v261
  %v263 = vpop.f32.mrb[0].mxu0
  %264 = vmatprep.mubr.f32.mxu0 0.0
  %265 = vmatmul.mubr.f32.gmra.mrb[0].mxu0 %v185
  %v266 = vpop.f32.mrb[0].mxu0
  %v267 = vadd.f32 0.0, %v266
  %v268 = vpop.f32.mrb[0].mxu0
  %269 = vmatprep.mubr.f32.mxu0 0.0
  %270 = vmatmul.mubr.f32.gmra.mrb[0].mxu0 %v188
  %v271 = vpop.f32.mrb[0].mxu0
  %v272 = vadd.f32 0.0, %v271
  %v273 = vpop.f32.mrb[0].mxu0
  %274 = vdwg.mxu0
  %v275 = vpack.c.bf16 %v262, %v257
  %v276 = vpack.c.bf16 %v272, %v267
  %v277 = vld [vmem:[%s1] sm:$0xf]
  %v278 = vld [vmem:[%s1 + $0x4] sm:$0xf]
  %v279 = vld [vmem:[%s1 + $0x8] sm:$0xf]
  %v280 = vld [vmem:[%s1 + $0xc] sm:$0xf]
  %v281 = vld [vmem:[%s1 + $0x10] sm:$0xf]
  %v282 = vld [vmem:[%s1 + $0x14] sm:$0xf]
  %v283 = vld [vmem:[%s1 + $0x18] sm:$0xf]
  %v284 = vld [vmem:[%s1 + $0x1c] sm:$0xf]
  %v285 = vld [vmem:[%s1 + $0x20] sm:$0xf]
  %v286 = vld [vmem:[%s1 + $0x24] sm:$0xf]
  %v287 = vld [vmem:[%s1 + $0x28] sm:$0xf]
  %v288 = vld [vmem:[%s1 + $0x2c] sm:$0xf]
  %v289 = vld [vmem:[%s1 + $0x30] sm:$0xf]
  %v290 = vld [vmem:[%s1 + $0x34] sm:$0xf]
  %v291 = vld [vmem:[%s1 + $0x38] sm:$0xf]
  %v292 = vld [vmem:[%s1 + $0x3c] sm:$0xf]
  %s293 = scalar_lea.vmem %s7, 32
  %v294 = vld [vmem:[%s293] sm:$0xff]
  %v295 = vld [vmem:[%s293 + $0x8] sm:$0xff]
  %v296 = vld [vmem:[%s293 + $0x10] sm:$0xff]
  %v297 = vld [vmem:[%s293 + $0x18] sm:$0xff]
  %299 = vset.pattern.permute.xlu0 0
  %300 = vperm.xlu0 %299, %v294
  %v301 = vpop.permute.xlu0 %300
  %304 = vset.pattern.permute.xlu0 0
  %305 = vperm.xlu0 %304, %v295
  %v306 = vpop.permute.xlu0 %305
  %309 = vset.pattern.permute.xlu0 0
  %310 = vperm.xlu0 %309, %v296
  %v311 = vpop.permute.xlu0 %310
  %314 = vset.pattern.permute.xlu0 0
  %315 = vperm.xlu0 %314, %v297
  %v316 = vpop.permute.xlu0 %315
  %v334 = vunpack.c.l.b16 %v277
  %v335 = vunpack.c.l.b16 %v278
  %v336 = vunpack.c.l.b16 %v279
  %v337 = vunpack.c.l.b16 %v280
  %v338 = vunpack.c.l.b16 %v281
  %v339 = vunpack.c.l.b16 %v282
  %v340 = vunpack.c.l.b16 %v283
  %v341 = vunpack.c.l.b16 %v284
  %v342 = vunpack.c.l.b16 %v285
  %v343 = vunpack.c.l.b16 %v286
  %v344 = vunpack.c.l.b16 %v287
  %v345 = vunpack.c.l.b16 %v288
  %v346 = vunpack.c.l.b16 %v289
  %v347 = vunpack.c.l.b16 %v290
  %v348 = vunpack.c.l.b16 %v291
  %v349 = vunpack.c.l.b16 %v292
  %v350 = vpack.c.b16 %v335, %v334
  %v351 = vpack.c.b16 %v337, %v336
  %v352 = vpack.c.b16 %v339, %v338
  %v353 = vpack.c.b16 %v341, %v340
  %v354 = vpack.c.b16 %v343, %v342
  %v355 = vpack.c.b16 %v345, %v344
  %v356 = vpack.c.b16 %v347, %v346
  %v357 = vpack.c.b16 %v349, %v348
  %366 = vmatprep.subr.bf16.mxu0 0
  %367 = vmatpush1.bf16.msra.mxu0 %v350
  %368 = vmatprep.subr.bf16.mxu0 0
  %369 = vmatpush1.bf16.msra.mxu0 %v351
  %370 = vmatprep.subr.bf16.mxu0 0
  %371 = vmatpush1.bf16.msra.mxu0 %v352
  %372 = vmatprep.subr.bf16.mxu0 0
  %373 = vmatpush1.bf16.msra.mxu0 %v353
  %374 = vmatprep.subr.bf16.mxu0 0
  %375 = vmatpush1.bf16.msra.mxu0 %v354
  %376 = vmatprep.subr.bf16.mxu0 0
  %377 = vmatpush1.bf16.msra.mxu0 %v355
  %378 = vmatprep.subr.bf16.mxu0 0
  %379 = vmatpush1.bf16.msra.mxu0 %v356
  %380 = vmatprep.subr.bf16.mxu0 0
  %381 = vmatpush1.bf16.msra.mxu0 %v357
  %382 = vmatprep.subr.bf16.mxu0 0
  %383 = vmatpush1.bf16.msra.mxu0 0
  %384 = vmatprep.subr.bf16.mxu0 0
  %385 = vmatpush1.bf16.msra.mxu0 0
  %386 = vmatprep.subr.bf16.mxu0 0
  %387 = vmatpush1.bf16.msra.mxu0 0
  %388 = vmatprep.subr.bf16.mxu0 0
  %389 = vmatpush1.bf16.msra.mxu0 0
  %390 = vmatprep.subr.bf16.mxu0 0
  %391 = vmatpush1.bf16.msra.mxu0 0
  %392 = vmatprep.subr.bf16.mxu0 0
  %393 = vmatpush1.bf16.msra.mxu0 0
  %394 = vmatprep.subr.bf16.mxu0 0
  %395 = vmatpush1.bf16.msra.mxu0 0
  %396 = vmatprep.subr.bf16.mxu0 0
  %397 = vmatpush1.bf16.msra.mxu0 0
  %398 = vmatprep.mubr.bf16.mxu0 0
  %399 = vmatmul.mubr.bf16.gmra.mrb[0].mxu0 %v275
  %v400 = vpop.f32.mrb[0].mxu0
  %v401 = vadd.f32 %v301, %v400
  %v402 = vpop.f32.mrb[0].mxu0
  %v403 = vpop.f32.mrb[0].mxu0
  %v404 = vadd.f32 %v306, %v403
  %v405 = vpop.f32.mrb[0].mxu0
  %406 = vmatprep.mubr.bf16.mxu0 0
  %407 = vmatmul.mubr.bf16.gmra.mrb[0].mxu0 %v276
  %v408 = vpop.f32.mrb[0].mxu0
  %v409 = vadd.f32 %v311, %v408
  %v410 = vpop.f32.mrb[0].mxu0
  %v411 = vpop.f32.mrb[0].mxu0
  %v412 = vadd.f32 %v316, %v411
  %v413 = vpop.f32.mrb[0].mxu0
  %414 = vdwg.mxu0
  %v415 = vmax.f32 %v401, 0.0
  %v416 = vmax.f32 %v404, 0.0
  %v417 = vmax.f32 %v409, 0.0
  %v418 = vmax.f32 %v412, 0.0
  %v420 = vlaneseq
  %v421 = vshrl.u32 %v420, 7
  %v422 = vsub.s32 0, %v421
  %v423 = vrot.slane %v40, %v422
  %v425 = vmul.f32 %v415, %v423
  %v426 = vmul.f32 %v416, %v423
  %v427 = vmul.f32 %v417, %v423
  %v428 = vmul.f32 %v418, %v423
  %v429 = vadd.f32 %v36, %v425
  %v430 = vadd.f32 %v37, %v426
  %v431 = vadd.f32 %v38, %v427
  %v432 = vadd.f32 %v39, %v428
  %s433 = scalar_lea.vmem %s4, 64
  %v434 = vld [vmem:[%s433] sm:$0xff]
  %v435 = vld [vmem:[%s433 + $0x8] sm:$0xff]
  %v436 = vld [vmem:[%s433 + $0x10] sm:$0xff]
  %v437 = vld [vmem:[%s433 + $0x18] sm:$0xff]
  %s438 = scalar_lea.vmem %s5, 64
  %v439 = vld [vmem:[%s438] sm:$0xff]
  %v440 = vld [vmem:[%s438 + $0x8] sm:$0xff]
  %v441 = vld [vmem:[%s438 + $0x10] sm:$0xff]
  %v442 = vld [vmem:[%s438 + $0x18] sm:$0xff]
  %444 = vset.pattern.permute.xlu0 0
  %445 = vperm.xlu0 %444, %v439
  %v446 = vpop.permute.xlu0 %445
  %449 = vset.pattern.permute.xlu0 0
  %450 = vperm.xlu0 %449, %v440
  %v451 = vpop.permute.xlu0 %450
  %454 = vset.pattern.permute.xlu0 0
  %455 = vperm.xlu0 %454, %v441
  %v456 = vpop.permute.xlu0 %455
  %459 = vset.pattern.permute.xlu0 0
  %460 = vperm.xlu0 %459, %v442
  %v461 = vpop.permute.xlu0 %460
  %v464 = vsel %vm71, %v434, 0
  %v467 = vsel %vm71, %v435, 0
  %v470 = vsel %vm71, %v436, 0
  %v473 = vsel %vm71, %v437, 0
  %475 = vmatprep.subr.mxu0 0.0
  %476 = vmatpush1.msra.mxu0 %v429
  %477 = vmatprep.subr.mxu0 0.0
  %478 = vmatpush1.msra.mxu0 %v430
  %479 = vmatprep.subr.mxu0 0.0
  %480 = vmatpush1.msra.mxu0 %v431
  %481 = vmatprep.subr.mxu0 0.0
  %482 = vmatpush1.msra.mxu0 %v432
  %483 = vmatprep.subr.mxu0 0.0
  %484 = vmatpush1.msra.mxu0 0.0
  %485 = vmatprep.subr.mxu0 0.0
  %486 = vmatpush1.msra.mxu0 0.0
  %487 = vmatprep.subr.mxu0 0.0
  %488 = vmatpush1.msra.mxu0 0.0
  %489 = vmatprep.subr.mxu0 0.0
  %490 = vmatpush1.msra.mxu0 0.0
  %491 = vmatprep.subr.mxu0 0.0
  %492 = vmatpush1.msra.mxu0 0.0
  %493 = vmatprep.subr.mxu0 0.0
  %494 = vmatpush1.msra.mxu0 0.0
  %495 = vmatprep.subr.mxu0 0.0
  %496 = vmatpush1.msra.mxu0 0.0
  %497 = vmatprep.subr.mxu0 0.0
  %498 = vmatpush1.msra.mxu0 0.0
  %499 = vmatprep.subr.mxu0 0.0
  %500 = vmatpush1.msra.mxu0 0.0
  %501 = vmatprep.subr.mxu0 0.0
  %502 = vmatpush1.msra.mxu0 0.0
  %503 = vmatprep.subr.mxu0 0.0
  %504 = vmatpush1.msra.mxu0 0.0
  %505 = vmatprep.subr.mxu0 0.0
  %506 = vmatpush1.msra.mxu0 0.0
  %507 = vmatprep.subr.mxu0 0.0
  %508 = vmatpush1.msra.mxu0 0.0
  %509 = vmatprep.subr.mxu0 0.0
  %510 = vmatpush1.msra.mxu0 0.0
  %511 = vmatprep.subr.mxu0 0.0
  %512 = vmatpush1.msra.mxu0 0.0
  %513 = vmatprep.subr.mxu0 0.0
  %514 = vmatpush1.msra.mxu0 0.0
  %515 = vmatprep.subr.mxu0 0.0
  %516 = vmatpush1.msra.mxu0 0.0
  %517 = vmatprep.subr.mxu0 0.0
  %518 = vmatpush1.msra.mxu0 0.0
  %519 = vmatprep.subr.mxu0 0.0
  %520 = vmatpush1.msra.mxu0 0.0
  %521 = vmatprep.subr.mxu0 0.0
  %522 = vmatpush1.msra.mxu0 0.0
  %523 = vmatprep.subr.mxu0 0.0
  %524 = vmatpush1.msra.mxu0 0.0
  %525 = vmatprep.subr.mxu0 0.0
  %526 = vmatpush1.msra.mxu0 0.0
  %527 = vmatprep.subr.mxu0 0.0
  %528 = vmatpush1.msra.mxu0 0.0
  %529 = vmatprep.subr.mxu0 0.0
  %530 = vmatpush1.msra.mxu0 0.0
  %531 = vmatprep.subr.mxu0 0.0
  %532 = vmatpush1.msra.mxu0 0.0
  %533 = vmatprep.subr.mxu0 0.0
  %534 = vmatpush1.msra.mxu0 0.0
  %535 = vmatprep.subr.mxu0 0.0
  %536 = vmatpush1.msra.mxu0 0.0
  %537 = vmatprep.subr.mxu0 0.0
  %538 = vmatpush1.msra.mxu0 0.0
  %539 = vmatprep.mubr.f32.mxu0 0.0
  %540 = vmatmul.mubr.f32.gmra.mrb[0].mxu0 %v464
  %v541 = vpop.f32.mrb[0].mxu0
  %v542 = vadd.f32 %v446, %v541
  %v543 = vpop.f32.mrb[0].mxu0
  %544 = vmatprep.mubr.f32.mxu0 0.0
  %545 = vmatmul.mubr.f32.gmra.mrb[0].mxu0 %v467
  %v546 = vpop.f32.mrb[0].mxu0
  %v547 = vadd.f32 %v451, %v546
  %v548 = vpop.f32.mrb[0].mxu0
  %549 = vmatprep.mubr.f32.mxu0 0.0
  %550 = vmatmul.mubr.f32.gmra.mrb[0].mxu0 %v470
  %v551 = vpop.f32.mrb[0].mxu0
  %v552 = vadd.f32 %v456, %v551
  %v553 = vpop.f32.mrb[0].mxu0
  %554 = vmatprep.mubr.f32.mxu0 0.0
  %555 = vmatmul.mubr.f32.gmra.mrb[0].mxu0 %v473
  %v556 = vpop.f32.mrb[0].mxu0
  %v557 = vadd.f32 %v461, %v556
  %v558 = vpop.f32.mrb[0].mxu0
  %559 = vdwg.mxu0
  %v560 = vmax.f32 %v542, 0.0
  %v561 = vmax.f32 %v547, 0.0
  %v562 = vmax.f32 %v552, 0.0
  %v563 = vmax.f32 %v557, 0.0
  %s564 = scalar_lea.vmem %s6, 64
  %v565 = vld [vmem:[%s564] sm:$0xff]
  %v566 = vld [vmem:[%s564 + $0x8] sm:$0xff]
  %v567 = vld [vmem:[%s564 + $0x10] sm:$0xff]
  %v568 = vld [vmem:[%s564 + $0x18] sm:$0xff]
  %v570 = vsel %vm71, %v565, 0
  %v573 = vsel %vm71, %v566, 0
  %v576 = vsel %vm71, %v567, 0
  %v579 = vsel %vm71, %v568, 0
  %581 = vmatprep.subr.mxu0 0.0
  %582 = vmatpush1.msra.mxu0 %v560
  %583 = vmatprep.subr.mxu0 0.0
  %584 = vmatpush1.msra.mxu0 %v561
  %585 = vmatprep.subr.mxu0 0.0
  %586 = vmatpush1.msra.mxu0 %v562
  %587 = vmatprep.subr.mxu0 0.0
  %588 = vmatpush1.msra.mxu0 %v563
  %589 = vmatprep.subr.mxu0 0.0
  %590 = vmatpush1.msra.mxu0 0.0
  %591 = vmatprep.subr.mxu0 0.0
  %592 = vmatpush1.msra.mxu0 0.0
  %593 = vmatprep.subr.mxu0 0.0
  %594 = vmatpush1.msra.mxu0 0.0
  %595 = vmatprep.subr.mxu0 0.0
  %596 = vmatpush1.msra.mxu0 0.0
  %597 = vmatprep.subr.mxu0 0.0
  %598 = vmatpush1.msra.mxu0 0.0
  %599 = vmatprep.subr.mxu0 0.0
  %600 = vmatpush1.msra.mxu0 0.0
  %601 = vmatprep.subr.mxu0 0.0
  %602 = vmatpush1.msra.mxu0 0.0
  %603 = vmatprep.subr.mxu0 0.0
  %604 = vmatpush1.msra.mxu0 0.0
  %605 = vmatprep.subr.mxu0 0.0
  %606 = vmatpush1.msra.mxu0 0.0
  %607 = vmatprep.subr.mxu0 0.0
  %608 = vmatpush1.msra.mxu0 0.0
  %609 = vmatprep.subr.mxu0 0.0
  %610 = vmatpush1.msra.mxu0 0.0
  %611 = vmatprep.subr.mxu0 0.0
  %612 = vmatpush1.msra.mxu0 0.0
  %613 = vmatprep.subr.mxu0 0.0
  %614 = vmatpush1.msra.mxu0 0.0
  %615 = vmatprep.subr.mxu0 0.0
  %616 = vmatpush1.msra.mxu0 0.0
  %617 = vmatprep.subr.mxu0 0.0
  %618 = vmatpush1.msra.mxu0 0.0
  %619 = vmatprep.subr.mxu0 0.0
  %620 = vmatpush1.msra.mxu0 0.0
  %621 = vmatprep.subr.mxu0 0.0
  %622 = vmatpush1.msra.mxu0 0.0
  %623 = vmatprep.subr.mxu0 0.0
  %624 = vmatpush1.msra.mxu0 0.0
  %625 = vmatprep.subr.mxu0 0.0
  %626 = vmatpush1.msra.mxu0 0.0
  %627 = vmatprep.subr.mxu0 0.0
  %628 = vmatpush1.msra.mxu0 0.0
  %629 = vmatprep.subr.mxu0 0.0
  %630 = vmatpush1.msra.mxu0 0.0
  %631 = vmatprep.subr.mxu0 0.0
  %632 = vmatpush1.msra.mxu0 0.0
  %633 = vmatprep.subr.mxu0 0.0
  %634 = vmatpush1.msra.mxu0 0.0
  %635 = vmatprep.subr.mxu0 0.0
  %636 = vmatpush1.msra.mxu0 0.0
  %637 = vmatprep.subr.mxu0 0.0
  %638 = vmatpush1.msra.mxu0 0.0
  %639 = vmatprep.subr.mxu0 0.0
  %640 = vmatpush1.msra.mxu0 0.0
  %641 = vmatprep.subr.mxu0 0.0
  %642 = vmatpush1.msra.mxu0 0.0
  %643 = vmatprep.subr.mxu0 0.0
  %644 = vmatpush1.msra.mxu0 0.0
  %645 = vmatprep.mubr.f32.mxu0 0.0
  %646 = vmatmul.mubr.f32.gmra.mrb[0].mxu0 %v570
  %v647 = vpop.f32.mrb[0].mxu0
  %v648 = vadd.f32 0.0, %v647
  %v649 = vpop.f32.mrb[0].mxu0
  %650 = vmatprep.mubr.f32.mxu0 0.0
  %651 = vmatmul.mubr.f32.gmra.mrb[0].mxu0 %v573
  %v652 = vpop.f32.mrb[0].mxu0
  %v653 = vadd.f32 0.0, %v652
  %v654 = vpop.f32.mrb[0].mxu0
  %655 = vmatprep.mubr.f32.mxu0 0.0
  %656 = vmatmul.mubr.f32.gmra.mrb[0].mxu0 %v576
  %v657 = vpop.f32.mrb[0].mxu0
  %v658 = vadd.f32 0.0, %v657
  %v659 = vpop.f32.mrb[0].mxu0
  %660 = vmatprep.mubr.f32.mxu0 0.0
  %661 = vmatmul.mubr.f32.gmra.mrb[0].mxu0 %v579
  %v662 = vpop.f32.mrb[0].mxu0
  %v663 = vadd.f32 0.0, %v662
  %v664 = vpop.f32.mrb[0].mxu0
  %665 = vdwg.mxu0
  %v666 = vpack.c.bf16 %v653, %v648
  %v667 = vpack.c.bf16 %v663, %v658
  %s668 = scalar_lea.vmem %s7, 64
  %v669 = vld [vmem:[%s668] sm:$0xff]
  %v670 = vld [vmem:[%s668 + $0x8] sm:$0xff]
  %v671 = vld [vmem:[%s668 + $0x10] sm:$0xff]
  %v672 = vld [vmem:[%s668 + $0x18] sm:$0xff]
  %674 = vset.pattern.permute.xlu0 0
  %675 = vperm.xlu0 %674, %v669
  %v676 = vpop.permute.xlu0 %675
  %679 = vset.pattern.permute.xlu0 0
  %680 = vperm.xlu0 %679, %v670
  %v681 = vpop.permute.xlu0 %680
  %684 = vset.pattern.permute.xlu0 0
  %685 = vperm.xlu0 %684, %v671
  %v686 = vpop.permute.xlu0 %685
  %689 = vset.pattern.permute.xlu0 0
  %690 = vperm.xlu0 %689, %v672
  %v691 = vpop.permute.xlu0 %690
  %693 = vmatprep.subr.bf16.mxu0 0
  %694 = vmatpush1.bf16.msra.mxu0 %v350
  %695 = vmatprep.subr.bf16.mxu0 0
  %696 = vmatpush1.bf16.msra.mxu0 %v351
  %697 = vmatprep.subr.bf16.mxu0 0
  %698 = vmatpush1.bf16.msra.mxu0 %v352
  %699 = vmatprep.subr.bf16.mxu0 0
  %700 = vmatpush1.bf16.msra.mxu0 %v353
  %701 = vmatprep.subr.bf16.mxu0 0
  %702 = vmatpush1.bf16.msra.mxu0 %v354
  %703 = vmatprep.subr.bf16.mxu0 0
  %704 = vmatpush1.bf16.msra.mxu0 %v355
  %705 = vmatprep.subr.bf16.mxu0 0
  %706 = vmatpush1.bf16.msra.mxu0 %v356
  %707 = vmatprep.subr.bf16.mxu0 0
  %708 = vmatpush1.bf16.msra.mxu0 %v357
  %709 = vmatprep.subr.bf16.mxu0 0
  %710 = vmatpush1.bf16.msra.mxu0 0
  %711 = vmatprep.subr.bf16.mxu0 0
  %712 = vmatpush1.bf16.msra.mxu0 0
  %713 = vmatprep.subr.bf16.mxu0 0
  %714 = vmatpush1.bf16.msra.mxu0 0
  %715 = vmatprep.subr.bf16.mxu0 0
  %716 = vmatpush1.bf16.msra.mxu0 0
  %717 = vmatprep.subr.bf16.mxu0 0
  %718 = vmatpush1.bf16.msra.mxu0 0
  %719 = vmatprep.subr.bf16.mxu0 0
  %720 = vmatpush1.bf16.msra.mxu0 0
  %721 = vmatprep.subr.bf16.mxu0 0
  %722 = vmatpush1.bf16.msra.mxu0 0
  %723 = vmatprep.subr.bf16.mxu0 0
  %724 = vmatpush1.bf16.msra.mxu0 0
  %725 = vmatprep.mubr.bf16.mxu0 0
  %726 = vmatmul.mubr.bf16.gmra.mrb[0].mxu0 %v666
  %v727 = vpop.f32.mrb[0].mxu0
  %v728 = vadd.f32 %v676, %v727
  %v729 = vpop.f32.mrb[0].mxu0
  %v730 = vpop.f32.mrb[0].mxu0
  %v731 = vadd.f32 %v681, %v730
  %v732 = vpop.f32.mrb[0].mxu0
  %733 = vmatprep.mubr.bf16.mxu0 0
  %734 = vmatmul.mubr.bf16.gmra.mrb[0].mxu0 %v667
  %v735 = vpop.f32.mrb[0].mxu0
  %v736 = vadd.f32 %v686, %v735
  %v737 = vpop.f32.mrb[0].mxu0
  %v738 = vpop.f32.mrb[0].mxu0
  %v739 = vadd.f32 %v691, %v738
  %v740 = vpop.f32.mrb[0].mxu0
  %741 = vdwg.mxu0
  %v742 = vmax.f32 %v728, 0.0
  %v743 = vmax.f32 %v731, 0.0
  %v744 = vmax.f32 %v736, 0.0
  %v745 = vmax.f32 %v739, 0.0
  %v746 = vmul.f32 %v742, %v423
  %v747 = vmul.f32 %v743, %v423
  %v748 = vmul.f32 %v744, %v423
  %v749 = vmul.f32 %v745, %v423
  %v750 = vadd.f32 %v429, %v746
  %v751 = vadd.f32 %v430, %v747
  %v752 = vadd.f32 %v431, %v748
  %v753 = vadd.f32 %v432, %v749
  %v754 = vld [vmem:[%s2] sm:$0xff]
  %v755 = vld [vmem:[%s2 + $0x8] sm:$0xff]
  %v756 = vld [vmem:[%s2 + $0x10] sm:$0xff]
  %v757 = vld [vmem:[%s2 + $0x18] sm:$0xff]
  %v758 = vld [vmem:[%s2 + $0x20] sm:$0xff]
  %v759 = vld [vmem:[%s2 + $0x28] sm:$0xff]
  %v760 = vld [vmem:[%s2 + $0x30] sm:$0xff]
  %v761 = vld [vmem:[%s2 + $0x38] sm:$0xff]
  %v762 = vld [vmem:[%s2 + $0x40] sm:$0xff]
  %v763 = vld [vmem:[%s2 + $0x48] sm:$0xff]
  %v764 = vld [vmem:[%s2 + $0x50] sm:$0xff]
  %v765 = vld [vmem:[%s2 + $0x58] sm:$0xff]
  %v766 = vld [vmem:[%s2 + $0x60] sm:$0xff]
  %v767 = vld [vmem:[%s2 + $0x68] sm:$0xff]
  %v768 = vld [vmem:[%s2 + $0x70] sm:$0xff]
  %v769 = vld [vmem:[%s2 + $0x78] sm:$0xff]
  %770 = vmatprep.subr.mxu0 0.0
  %771 = vmatpush1.msra.mxu0 %v754
  %772 = vmatprep.subr.mxu0 0.0
  %773 = vmatpush1.msra.mxu0 %v755
  %774 = vmatprep.subr.mxu0 0.0
  %775 = vmatpush1.msra.mxu0 %v756
  %776 = vmatprep.subr.mxu0 0.0
  %777 = vmatpush1.msra.mxu0 %v757
  %778 = vmatprep.subr.mxu0 0.0
  %779 = vmatpush1.msra.mxu0 %v758
  %780 = vmatprep.subr.mxu0 0.0
  %781 = vmatpush1.msra.mxu0 %v759
  %782 = vmatprep.subr.mxu0 0.0
  %783 = vmatpush1.msra.mxu0 %v760
  %784 = vmatprep.subr.mxu0 0.0
  %785 = vmatpush1.msra.mxu0 %v761
  %786 = vmatprep.subr.mxu0 0.0
  %787 = vmatpush1.msra.mxu0 %v762
  %788 = vmatprep.subr.mxu0 0.0
  %789 = vmatpush1.msra.mxu0 %v763
  %790 = vmatprep.subr.mxu0 0.0
  %791 = vmatpush1.msra.mxu0 %v764
  %792 = vmatprep.subr.mxu0 0.0
  %793 = vmatpush1.msra.mxu0 %v765
  %794 = vmatprep.subr.mxu0 0.0
  %795 = vmatpush1.msra.mxu0 %v766
  %796 = vmatprep.subr.mxu0 0.0
  %797 = vmatpush1.msra.mxu0 %v767
  %798 = vmatprep.subr.mxu0 0.0
  %799 = vmatpush1.msra.mxu0 %v768
  %800 = vmatprep.subr.mxu0 0.0
  %801 = vmatpush1.msra.mxu0 %v769
  %802 = vmatprep.subr.mxu0 0.0
  %803 = vmatpush1.msra.mxu0 0.0
  %804 = vmatprep.subr.mxu0 0.0
  %805 = vmatpush1.msra.mxu0 0.0
  %806 = vmatprep.subr.mxu0 0.0
  %807 = vmatpush1.msra.mxu0 0.0
  %808 = vmatprep.subr.mxu0 0.0
  %809 = vmatpush1.msra.mxu0 0.0
  %810 = vmatprep.subr.mxu0 0.0
  %811 = vmatpush1.msra.mxu0 0.0
  %812 = vmatprep.subr.mxu0 0.0
  %813 = vmatpush1.msra.mxu0 0.0
  %814 = vmatprep.subr.mxu0 0.0
  %815 = vmatpush1.msra.mxu0 0.0
  %816 = vmatprep.subr.mxu0 0.0
  %817 = vmatpush1.msra.mxu0 0.0
  %818 = vmatprep.subr.mxu0 0.0
  %819 = vmatpush1.msra.mxu0 0.0
  %820 = vmatprep.subr.mxu0 0.0
  %821 = vmatpush1.msra.mxu0 0.0
  %822 = vmatprep.subr.mxu0 0.0
  %823 = vmatpush1.msra.mxu0 0.0
  %824 = vmatprep.subr.mxu0 0.0
  %825 = vmatpush1.msra.mxu0 0.0
  %826 = vmatprep.subr.mxu0 0.0
  %827 = vmatpush1.msra.mxu0 0.0
  %828 = vmatprep.subr.mxu0 0.0
  %829 = vmatpush1.msra.mxu0 0.0
  %830 = vmatprep.subr.mxu0 0.0
  %831 = vmatpush1.msra.mxu0 0.0
  %832 = vmatprep.subr.mxu0 0.0
  %833 = vmatpush1.msra.mxu0 0.0
  %834 = vmatprep.mubr.f32.mxu0 0.0
  %835 = vmatmul.mubr.f32.gmra.mrb[0].mxu0 %v750
  %v836 = vpop.f32.mrb[0].mxu0
  %v837 = vadd.f32 0.0, %v836
  %v838 = vpop.f32.mrb[0].mxu0
  %839 = vmatprep.mubr.f32.mxu0 0.0
  %840 = vmatmul.mubr.f32.gmra.mrb[0].mxu0 %v751
  %v841 = vpop.f32.mrb[0].mxu0
  %v842 = vadd.f32 0.0, %v841
  %v843 = vpop.f32.mrb[0].mxu0
  %844 = vmatprep.mubr.f32.mxu0 0.0
  %845 = vmatmul.mubr.f32.gmra.mrb[0].mxu0 %v752
  %v846 = vpop.f32.mrb[0].mxu0
  %v847 = vadd.f32 0.0, %v846
  %v848 = vpop.f32.mrb[0].mxu0
  %849 = vmatprep.mubr.f32.mxu0 0.0
  %850 = vmatmul.mubr.f32.gmra.mrb[0].mxu0 %v753
  %v851 = vpop.f32.mrb[0].mxu0
  %v852 = vadd.f32 0.0, %v851
  %v853 = vpop.f32.mrb[0].mxu0
  %854 = vdwg.mxu0
  %v855 = vld [vmem:[%s8] sm:$0xff]
  %v856 = vld [vmem:[%s8 + $0x8] sm:$0xff]
  %v857 = vld [vmem:[%s9] sm:$0xff]
  %v858 = vld [vmem:[%s9 + $0x8] sm:$0xff]
  %860 = vset.pattern.permute.xlu0 0
  %861 = vperm.xlu0 %860, %v857
  %v862 = vpop.permute.xlu0 %861
  %865 = vset.pattern.permute.xlu0 0
  %866 = vperm.xlu0 %865, %v858
  %v867 = vpop.permute.xlu0 %866
  %v870 = vsel %vm71, %v855, 0
  %v873 = vsel %vm71, %v856, 0
  %875 = vmatprep.subr.mxu0 0.0
  %876 = vmatpush1.msra.mxu0 %v837
  %877 = vmatprep.subr.mxu0 0.0
  %878 = vmatpush1.msra.mxu0 %v842
  %879 = vmatprep.subr.mxu0 0.0
  %880 = vmatpush1.msra.mxu0 %v847
  %881 = vmatprep.subr.mxu0 0.0
  %882 = vmatpush1.msra.mxu0 %v852
  %883 = vmatprep.subr.mxu0 0.0
  %884 = vmatpush1.msra.mxu0 0.0
  %885 = vmatprep.subr.mxu0 0.0
  %886 = vmatpush1.msra.mxu0 0.0
  %887 = vmatprep.subr.mxu0 0.0
  %888 = vmatpush1.msra.mxu0 0.0
  %889 = vmatprep.subr.mxu0 0.0
  %890 = vmatpush1.msra.mxu0 0.0
  %891 = vmatprep.subr.mxu0 0.0
  %892 = vmatpush1.msra.mxu0 0.0
  %893 = vmatprep.subr.mxu0 0.0
  %894 = vmatpush1.msra.mxu0 0.0
  %895 = vmatprep.subr.mxu0 0.0
  %896 = vmatpush1.msra.mxu0 0.0
  %897 = vmatprep.subr.mxu0 0.0
  %898 = vmatpush1.msra.mxu0 0.0
  %899 = vmatprep.subr.mxu0 0.0
  %900 = vmatpush1.msra.mxu0 0.0
  %901 = vmatprep.subr.mxu0 0.0
  %902 = vmatpush1.msra.mxu0 0.0
  %903 = vmatprep.subr.mxu0 0.0
  %904 = vmatpush1.msra.mxu0 0.0
  %905 = vmatprep.subr.mxu0 0.0
  %906 = vmatpush1.msra.mxu0 0.0
  %907 = vmatprep.subr.mxu0 0.0
  %908 = vmatpush1.msra.mxu0 0.0
  %909 = vmatprep.subr.mxu0 0.0
  %910 = vmatpush1.msra.mxu0 0.0
  %911 = vmatprep.subr.mxu0 0.0
  %912 = vmatpush1.msra.mxu0 0.0
  %913 = vmatprep.subr.mxu0 0.0
  %914 = vmatpush1.msra.mxu0 0.0
  %915 = vmatprep.subr.mxu0 0.0
  %916 = vmatpush1.msra.mxu0 0.0
  %917 = vmatprep.subr.mxu0 0.0
  %918 = vmatpush1.msra.mxu0 0.0
  %919 = vmatprep.subr.mxu0 0.0
  %920 = vmatpush1.msra.mxu0 0.0
  %921 = vmatprep.subr.mxu0 0.0
  %922 = vmatpush1.msra.mxu0 0.0
  %923 = vmatprep.subr.mxu0 0.0
  %924 = vmatpush1.msra.mxu0 0.0
  %925 = vmatprep.subr.mxu0 0.0
  %926 = vmatpush1.msra.mxu0 0.0
  %927 = vmatprep.subr.mxu0 0.0
  %928 = vmatpush1.msra.mxu0 0.0
  %929 = vmatprep.subr.mxu0 0.0
  %930 = vmatpush1.msra.mxu0 0.0
  %931 = vmatprep.subr.mxu0 0.0
  %932 = vmatpush1.msra.mxu0 0.0
  %933 = vmatprep.subr.mxu0 0.0
  %934 = vmatpush1.msra.mxu0 0.0
  %935 = vmatprep.subr.mxu0 0.0
  %936 = vmatpush1.msra.mxu0 0.0
  %937 = vmatprep.subr.mxu0 0.0
  %938 = vmatpush1.msra.mxu0 0.0
  %939 = vmatprep.mubr.f32.mxu0 0.0
  %940 = vmatmul.mubr.f32.gmra.mrb[0].mxu0 %v870
  %v941 = vpop.f32.mrb[0].mxu0
  %v942 = vadd.f32 %v862, %v941
  %v943 = vpop.f32.mrb[0].mxu0
  %944 = vmatprep.mubr.f32.mxu0 0.0
  %945 = vmatmul.mubr.f32.gmra.mrb[0].mxu0 %v873
  %v946 = vpop.f32.mrb[0].mxu0
  %v947 = vadd.f32 %v867, %v946
  %v948 = vpop.f32.mrb[0].mxu0
  %949 = vdwg.mxu0
  %vm950 = vcmask 15360
  %951 = vst.msk [vmem:[%s10] sm:$0xff] %vm950, %v942
  %952 = vst.msk [vmem:[%s10 + $0x8] sm:$0xff] %vm950, %v947
  // Predicated region
  $region42: #{tpu_custom_call.1} parent=0 // pred_check
    _
  $region43: #{tpu_custom_call.1} parent=0 // pred_check_branch
    %954 = sbr.rel (0) target = $region45
  $region44: #{tpu_custom_call.1} parent=0 // pred_region
    _
  $region45: #{tpu_custom_call.1} parent=0 // pred_fallthru
    _
  // Predicated region
  $region46: #{tpu_custom_call.1} parent=0 // pred_check
    _
  $region47: #{tpu_custom_call.1} parent=0 // pred_check_branch
    %956 = sbr.rel (0) target = $region49
  $region48: #{tpu_custom_call.1} parent=0 // pred_region
    _
  $region49: #{tpu_custom_call.1} parent=0 // pred_fallthru
    _

</llo_original>
